<compile_context>
chip_gen: v7x
topology: tpu7x:2x2x1
jax: 0.10.0
libtpu: 0.0.40
codegen_flags: <defaults>
</compile_context>

<pallas_src>
import functools

import jax
import jax.numpy as jnp
from jax import lax
from jax.experimental import pallas as pl
from jax.experimental.pallas import tpu as pltpu


def _round_up(a: int, b: int) -> int:
    return ((a + b - 1) // b) * b


def _round_down(a: int, b: int) -> int:
    return (a // b) * b


def _gap_kernel(x_ref, o_ref, acc_ref, *, hw: int, hw_tile: int, mask_hw: bool):
    """One (row-tile, hw-tile) grid step of the global average pool."""
    k = pl.program_id(1)

    @pl.when(k == 0)
    def _init():
        acc_ref[...] = jnp.zeros_like(acc_ref)

    x = x_ref[...]  # (tile_rows, hw_tile), input dtype
    if mask_hw:
        # The last hw tile may read past the spatial extent; zero those lanes
        # so padding garbage (possibly NaN/Inf) cannot contribute to the sum.
        col = lax.broadcasted_iota(jnp.int32, x.shape, 1)
        x = jnp.where(col < (hw - k * hw_tile), x, jnp.zeros_like(x))

    # Row-sum on the MXU with f32 accumulation.  Contracting dim 1 of both
    # operands gives a (1, tile_rows) lane-major partial sum, so the final
    # store is lane-dense (no width-1 masked stores).
    ones = jnp.ones((1, x.shape[1]), dtype=x.dtype)
    partial = lax.dot_general(
        ones,
        x,
        dimension_numbers=(((1,), (1,)), ((), ())),
        preferred_element_type=jnp.float32,
    )
    acc_ref[...] += partial

    @pl.when(k == pl.num_programs(1) - 1)
    def _finalize():
        mean = acc_ref[...] * (1.0 / hw)              # (1, tile_rows) f32
        o_ref[...] = mean[None].astype(o_ref.dtype)   # (1, 1, tile_rows)


def global_avg_pool2d(x: jax.Array, *, tile_target_bytes: int = 4 * 1024 * 1024) -> jax.Array:
    """Equivalent of F.avg_pool2d(x, kernel_size=x.shape[2:]) for NCHW input."""
    n, c, h, w = x.shape
    rows, hw = n * c, h * w
    itemsize = jnp.dtype(x.dtype).itemsize
    # Sublane packing multiple: 8 for f32, 16 for bf16, 32 for int8/fp8.
    pack = max(8, 32 // itemsize)

    x2d = x.reshape(rows, hw)
    row_bytes = hw * itemsize

    if pack * row_bytes <= tile_target_bytes:
        # Whole spatial extent fits in one block: tile only the row axis,
        # picking the largest row tile that fits the VMEM budget
        # (double-buffered: 2 x tile fits comfortably under the scoped limit).
        hw_tile = hw
        max_rows = max(pack, _round_down(tile_target_bytes // row_bytes, pack))
        tile_rows = min(_round_up(rows, pack), max_rows)
        if rows > pack:
            # Keep at least 2 row tiles so the "parallel" axis can shard
            # across TensorCores (v7x megacore) without shrinking tiles much.
            tile_rows = min(tile_rows, max(pack, _round_up(pl.cdiv(rows, 2), pack)))
    else:
        # Very large H*W: split the spatial axis and accumulate across tiles.
        tile_rows = pack
        hw_tile = max(128, _round_down(tile_target_bytes // (pack * itemsize), 128))

    num_row_tiles = pl.cdiv(rows, tile_rows)
    num_hw_tiles = pl.cdiv(hw, hw_tile)
    mask_hw = (hw % hw_tile) != 0

    kernel = functools.partial(_gap_kernel, hw=hw, hw_tile=hw_tile, mask_hw=mask_hw)

    out3d = pl.pallas_call(
        kernel,
        out_shape=jax.ShapeDtypeStruct((num_row_tiles, 1, tile_rows), x.dtype),
        grid_spec=pltpu.PrefetchScalarGridSpec(
            num_scalar_prefetch=0,
            grid=(num_row_tiles, num_hw_tiles),
            in_specs=[pl.BlockSpec((tile_rows, hw_tile), lambda i, k: (i, k))],
            out_specs=pl.BlockSpec((1, 1, tile_rows), lambda i, k: (i, 0, 0)),
            scratch_shapes=[pltpu.VMEM((1, tile_rows), jnp.float32)],
        ),
        compiler_params=pltpu.CompilerParams(
            dimension_semantics=("parallel", "arbitrary"),
            vmem_limit_bytes=32 * 1024 * 1024,  # explicit; safe on v5e/v6e/v7x
        ),
        cost_estimate=pl.CostEstimate(
            flops=2 * rows * hw,
            transcendentals=0,
            bytes_accessed=rows * hw * itemsize + rows * itemsize,
        ),
    )(x2d)

    # Row-tile-major flatten equals global row order; drop padded rows.
    out = out3d.reshape(num_row_tiles * tile_rows)[:rows]
    return out.reshape(n, c, 1, 1)


if __name__ == "__main__":
    key = jax.random.PRNGKey(0)
    # Shapes consistent with an NiN-style feature map: (N, C, H, W)
    x = jax.random.normal(key, (2, 4, 16, 16), dtype=jnp.float32)
    out = global_avg_pool2d(x)
    jax.block_until_ready(out)

    ref = jnp.mean(x, axis=(2, 3), keepdims=True)
    assert out.shape == (2, 4, 1, 1)
    assert jnp.allclose(out, ref, atol=1e-5, rtol=1e-5)

    # Ragged case: N*C not a multiple of 8, H*W not a multiple of 128.
    x2 = jax.random.normal(jax.random.PRNGKey(1), (3, 5, 7, 9), dtype=jnp.float32)
    out2 = global_avg_pool2d(x2)
    jax.block_until_ready(out2)
    ref2 = jnp.mean(x2, axis=(2, 3), keepdims=True)
    assert out2.shape == (3, 5, 1, 1)
    assert jnp.allclose(out2, ref2, atol=1e-5, rtol=1e-5)

    print("KERNEL_OK")
</pallas_src>

<mosaic_0001>
module attributes {stable_mosaic.version = 11 : i64} {
  func.func @_gap_kernel(%arg0: i32, %arg1: i32, %arg2: memref<8x256xf32, #tpu.memory_space<vmem>>, %arg3: memref<1x1x8xf32, #tpu.memory_space<vmem>>, %arg4: memref<1x8xf32, #tpu.memory_space<vmem>>) attributes {dimension_semantics = [#tpu.dimension_semantics<parallel>, #tpu.dimension_semantics<arbitrary>], iteration_bounds = array<i64: 1, 1>, scalar_prefetch = 0 : i64, scratch_operands = 1 : i64, tpu.core_type = #tpu.core_type<tc>, window_params = [{transform_indices = @transform_0, window_bounds = array<i64: 8, 256>}, {transform_indices = @transform_1, window_bounds = array<i64: 1, 1, 8>}]} {
    %c0_i32 = arith.constant 0 : i32
    %0 = arith.cmpi eq, %arg1, %c0_i32 : i32
    %1 = arith.extui %0 : i1 to i32
    %c0_i32_0 = arith.constant 0 : i32
    %2 = arith.cmpi ne, %1, %c0_i32_0 : i32
    scf.if %2 {
      %cst_9 = arith.constant 0.000000e+00 : f32
      %12 = vector.broadcast %cst_9 : f32 to vector<1x8xf32>
      %c0_10 = arith.constant 0 : index
      %c0_11 = arith.constant 0 : index
      %13 = vector.load %arg4[%c0_10, %c0_11] : memref<1x8xf32, #tpu.memory_space<vmem>>, vector<1x8xf32>
      tpu.vector_store %arg4[%c0_10, %c0_11], %12 {strides = array<i32>} : memref<1x8xf32, #tpu.memory_space<vmem>>, vector<1x8xf32>,
    } else {
    }
    %c0 = arith.constant 0 : index
    %c0_1 = arith.constant 0 : index
    %3 = vector.load %arg2[%c0, %c0_1] : memref<8x256xf32, #tpu.memory_space<vmem>>, vector<8x256xf32>
    %cst = arith.constant 1.000000e+00 : f32
    %4 = vector.broadcast %cst : f32 to vector<1x256xf32>
    %cst_2 = arith.constant dense<0.000000e+00> : vector<1x8xf32>
    %5 = tpu.matmul %4, %3, %cst_2 {dimension_numbers = #tpu.dot_dimension_numbers<[1], [1], [0], [0], [0, 0, 1, 0], [], []>} : vector<1x256xf32>, vector<8x256xf32>, vector<1x8xf32> -> vector<1x8xf32>
    %c0_3 = arith.constant 0 : index
    %c0_4 = arith.constant 0 : index
    %6 = vector.load %arg4[%c0_3, %c0_4] : memref<1x8xf32, #tpu.memory_space<vmem>>, vector<1x8xf32>
    %7 = arith.addf %6, %5 : vector<1x8xf32>
    %c0_5 = arith.constant 0 : index
    %c0_6 = arith.constant 0 : index
    %8 = vector.load %arg4[%c0_5, %c0_6] : memref<1x8xf32, #tpu.memory_space<vmem>>, vector<1x8xf32>
    tpu.vector_store %arg4[%c0_5, %c0_6], %7 {strides = array<i32>} : memref<1x8xf32, #tpu.memory_space<vmem>>, vector<1x8xf32>,
    %c0_i32_7 = arith.constant 0 : i32
    %9 = arith.cmpi eq, %arg1, %c0_i32_7 : i32
    %10 = arith.extui %9 : i1 to i32
    %c0_i32_8 = arith.constant 0 : i32
    %11 = arith.cmpi ne, %10, %c0_i32_8 : i32
    scf.if %11 {
      %c0_9 = arith.constant 0 : index
      %c0_10 = arith.constant 0 : index
      %12 = vector.load %arg4[%c0_9, %c0_10] : memref<1x8xf32, #tpu.memory_space<vmem>>, vector<1x8xf32>
      %cst_11 = arith.constant 3.906250e-03 : f32
      %13 = vector.broadcast %cst_11 : f32 to vector<1x8xf32>
      %14 = arith.mulf %12, %13 : vector<1x8xf32>
      %15 = vector.shape_cast %14 : vector<1x8xf32> to vector<1x1x8xf32>
      %c0_12 = arith.constant 0 : index
      %c0_13 = arith.constant 0 : index
      %c0_14 = arith.constant 0 : index
      %16 = vector.load %arg3[%c0_12, %c0_13, %c0_14] : memref<1x1x8xf32, #tpu.memory_space<vmem>>, vector<1x1x8xf32>
      tpu.vector_store %arg3[%c0_12, %c0_13, %c0_14], %15 {strides = array<i32>} : memref<1x1x8xf32, #tpu.memory_space<vmem>>, vector<1x1x8xf32>,
    } else {
    }
    return
  }
  func.func @transform_0(%arg0: i32, %arg1: i32) -> (i32, i32) {
    %c0_i32 = arith.constant 0 : i32
    return %arg0, %arg1 : i32, i32
  }
  func.func @transform_1(%arg0: i32, %arg1: i32) -> (i32, i32, i32) {
    %c0_i32 = arith.constant 0 : i32
    %c0_i32_0 = arith.constant 0 : i32
    %c0_i32_1 = arith.constant 0 : i32
    return %arg0, %c0_i32, %c0_i32_0 : i32, i32, i32
  }
}

</mosaic_0001>

<llo_original>
// kernel: tpu_custom_call.1
$region0: #{tpu_custom_call.1}
  #allocation0 [shape = 'u32[]', space=smem, size = 0x4, offset = 0x4, fixed_abs, tag = 'smem constant byte address 0x4 - core index']
  #allocation1 [shape = 'u32[144,128]{1,0:T(1,128)}', space=vmem, size = 0x12000, scoped, tag = 'internal scratch']
  #allocation2 [shape = 'f32[1,8]{1,0:T(1,128)}', space=vmem, size = 0x200, scoped, tag = 'scratch operand']
  %s0 = inlined_call_operand.hbm [shape: f32[8,256], index: 0, kind: input, shape index: {}]
  %s1 = inlined_call_operand.hbm [shape: f32[1,1,8], index: 1, kind: output, shape index: {}]
  %s2 = sld [smem:[#allocation0]]
  $region26: #{tpu_custom_call.1} parent=0
    _
  %s4 = ssub.s32 1, %s2
  %s5 = scalar_select 0, %s4, %s2
  $region1: #{tpu_custom_call.1} parent=0
    #allocation3 [shape = 'u8[8192]{0}', space=vmem, size = 0x2000, scoped, tag = 'input window, operand 0, single buffered']
    #allocation4 [shape = 's32[1]{0}', space=sflag, size = 0x4, scoped, tag = 'scoped memory for tpu_custom_call.1']
    #allocation5 [shape = 's32[1]{0}', space=sflag, size = 0x4, scoped, tag = 'scoped memory for tpu_custom_call.1']
    #allocation6 [shape = 'u8[512]{0}', space=vmem, size = 0x400, scoped, tag = 'output window, operand 0, single buffered']
    %6 = vsyncpa [#allocation4], 0
    %7 = vsyncpa [#allocation5], 0
    // Predicated region
    $region2: #{tpu_custom_call.1} parent=1 // pred_check
      _
    $region3: #{tpu_custom_call.1} parent=1 // pred_check_branch
      %9 = sbr.rel (0) target = $region5
    $region4: #{tpu_custom_call.1} parent=1 // pred_region
      %s11 = ssub.s32 256, 256
      %12 = vsyncadd [#allocation4], %s11
      %s14 = sshll.u32 [#allocation3], 4
      %s15 = int_to_ptr.vmem [resolvable:$true] %s14
      %17 = dma.hbm_to_vmem [thread:$0]  %s0, 256, %s15, [#allocation4]
    $region5: #{tpu_custom_call.1} parent=1 // pred_fallthru
      _
    // Predicated region
    $region6: #{tpu_custom_call.1} parent=1 // pred_check
      _
    $region7: #{tpu_custom_call.1} parent=1 // pred_check_branch
      %19 = sbr.rel (0) target = $region9
    $region8: #{tpu_custom_call.1} parent=1 // pred_region
      %20 = dma.done [#allocation4], 256
    $region9: #{tpu_custom_call.1} parent=1 // pred_fallthru
      _
    %p21 = scmp.eq.s32.totalorder 0, 0
    // Predicated region
    $region10: #{tpu_custom_call.1} parent=1 // pred_check
      %p22 = pneg %p21
    $region11: #{tpu_custom_call.1} parent=1 // pred_check_branch
      %24 = sbr.rel (%p22) target = $region13
    $region12: #{tpu_custom_call.1} parent=1 // pred_region
      %vm25 = vcmask 57344
      %26 = vst.msk [vmem:[#allocation2] sm:$0x1] %vm25, 0.0
    $region13: #{tpu_custom_call.1} parent=1 // pred_fallthru
      _
    %v27 = vld [vmem:[#allocation3] sm:$0xff]
    %v28 = vld [vmem:[#allocation3 + $0x8] sm:$0xff]
    %29 = vmatprep.subr.mxu0 %v28
    %30 = vmatpush1.xpose.msra.mxu0 %v27
    %31 = vmatprep.subr.mxu0 0.0
    %32 = vmatpush1.xpose.msra.mxu0 0.0
    %33 = vmatprep.subr.mxu0 0.0
    %34 = vmatpush1.xpose.msra.mxu0 0.0
    %35 = vmatprep.subr.mxu0 0.0
    %36 = vmatpush1.xpose.msra.mxu0 0.0
    %37 = vmatprep.subr.mxu0 0.0
    %38 = vmatpush1.xpose.msra.mxu0 0.0
    %39 = vmatprep.subr.mxu0 0.0
    %40 = vmatpush1.xpose.msra.mxu0 0.0
    %41 = vmatprep.subr.mxu0 0.0
    %42 = vmatpush1.xpose.msra.mxu0 0.0
    %43 = vmatprep.subr.mxu0 0.0
    %44 = vmatpush1.xpose.msra.mxu0 0.0
    %45 = vmatprep.subr.mxu0 0.0
    %46 = vmatpush1.xpose.msra.mxu0 0.0
    %47 = vmatprep.subr.mxu0 0.0
    %48 = vmatpush1.xpose.msra.mxu0 0.0
    %49 = vmatprep.subr.mxu0 0.0
    %50 = vmatpush1.xpose.msra.mxu0 0.0
    %51 = vmatprep.subr.mxu0 0.0
    %52 = vmatpush1.xpose.msra.mxu0 0.0
    %53 = vmatprep.subr.mxu0 0.0
    %54 = vmatpush1.xpose.msra.mxu0 0.0
    %55 = vmatprep.subr.mxu0 0.0
    %56 = vmatpush1.xpose.msra.mxu0 0.0
    %57 = vmatprep.subr.mxu0 0.0
    %58 = vmatpush1.xpose.msra.mxu0 0.0
    %59 = vmatprep.subr.mxu0 0.0
    %60 = vmatpush1.xpose.msra.mxu0 0.0
    %61 = vmatprep.subr.mxu0 0.0
    %62 = vmatpush1.xpose.msra.mxu0 0.0
    %63 = vmatprep.subr.mxu0 0.0
    %64 = vmatpush1.xpose.msra.mxu0 0.0
    %65 = vmatprep.subr.mxu0 0.0
    %66 = vmatpush1.xpose.msra.mxu0 0.0
    %67 = vmatprep.subr.mxu0 0.0
    %68 = vmatpush1.xpose.msra.mxu0 0.0
    %69 = vmatprep.subr.mxu0 0.0
    %70 = vmatpush1.xpose.msra.mxu0 0.0
    %71 = vmatprep.subr.mxu0 0.0
    %72 = vmatpush1.xpose.msra.mxu0 0.0
    %73 = vmatprep.subr.mxu0 0.0
    %74 = vmatpush1.xpose.msra.mxu0 0.0
    %75 = vmatprep.subr.mxu0 0.0
    %76 = vmatpush1.xpose.msra.mxu0 0.0
    %77 = vmatprep.subr.mxu0 0.0
    %78 = vmatpush1.xpose.msra.mxu0 0.0
    %79 = vmatprep.subr.mxu0 0.0
    %80 = vmatpush1.xpose.msra.mxu0 0.0
    %81 = vmatprep.subr.mxu0 0.0
    %82 = vmatpush1.xpose.msra.mxu0 0.0
    %83 = vmatprep.subr.mxu0 0.0
    %84 = vmatpush1.xpose.msra.mxu0 0.0
    %85 = vmatprep.subr.mxu0 0.0
    %86 = vmatpush1.xpose.msra.mxu0 0.0
    %87 = vmatprep.subr.mxu0 0.0
    %88 = vmatpush1.xpose.msra.mxu0 0.0
    %89 = vmatprep.subr.mxu0 0.0
    %90 = vmatpush1.xpose.msra.mxu0 0.0
    %91 = vmatprep.subr.mxu0 0.0
    %92 = vmatpush1.xpose.msra.mxu0 0.0
    %93 = vmatprep.mubr.f32.mxu0 1.0
    %94 = vmatmul.mubr.f32.gmra.mrb[0].mxu0 1.0
    %v95 = vpop.f32.mrb[0].mxu0
    %v96 = vadd.f32 0.0, %v95
    %v97 = vpop.f32.mrb[0].mxu0
    %98 = vdwg.mxu0
    %v99 = vld [vmem:[#allocation2] sm:$0x1]
    %v100 = vadd.f32 %v99, %v96
    %vm101 = vcmask 57344
    %102 = vst.msk [vmem:[#allocation2] sm:$0x1] %vm101, %v100
    // Predicated region
    $region14: #{tpu_custom_call.1} parent=1 // pred_check
      %p103 = pneg %p21
    $region15: #{tpu_custom_call.1} parent=1 // pred_check_branch
      %105 = sbr.rel (%p103) target = $region17
    $region16: #{tpu_custom_call.1} parent=1 // pred_region
      %v106 = vld [vmem:[#allocation2] sm:$0x1]
      %v107 = vmul.f32 %v106, 0.00390625
      %108 = vst.msk [vmem:[#allocation6] sm:$0x1] %vm101, %v107
    $region17: #{tpu_custom_call.1} parent=1 // pred_fallthru
      _
    // Predicated region
    $region18: #{tpu_custom_call.1} parent=1 // pred_check
      _
    $region19: #{tpu_custom_call.1} parent=1 // pred_check_branch
      %110 = sbr.rel (0) target = $region21
    $region20: #{tpu_custom_call.1} parent=1 // pred_region
      %s112 = ssub.s32 16, 16
      %113 = vsyncadd [#allocation5], %s112
      %s115 = sshll.u32 [#allocation6], 4
      %s116 = int_to_ptr.vmem [resolvable:$true] %s115
      %118 = dma.vmem_to_hbm [thread:$0]  %s116, 16, %s1, [#allocation5]
    $region21: #{tpu_custom_call.1} parent=1 // pred_fallthru
      _
    // Predicated region
    $region22: #{tpu_custom_call.1} parent=1 // pred_check
      _
    $region23: #{tpu_custom_call.1} parent=1 // pred_check_branch
      %120 = sbr.rel (0) target = $region25
    $region24: #{tpu_custom_call.1} parent=1 // pred_region
      %121 = dma.done [#allocation5], 16
    $region25: #{tpu_custom_call.1} parent=1 // pred_fallthru
      _
    %122 = vsyncpa [#allocation4], 1
    %123 = vsyncpa [#allocation5], 1

</llo_original>
